<compile_context>
chip_gen: v6e
topology: v6e:2x2x1
jax: 0.10.0
libtpu: 0.0.40
codegen_flags: <defaults>
</compile_context>

<pallas_src>
import functools

import jax
import jax.numpy as jnp
from jax import lax
from jax.experimental import pallas as pl
from jax.experimental.pallas import tpu as pltpu


def _round_up(a, b):
    return (a + b - 1) // b * b


def _assemble_patch(xb, *, kh, kw, stride, tile_oh, OW):
    """Mini-im2col: (band_h, Wp, C_in) -> (tile_oh*OW, kh*kw*C_in).

    Done once per grid step so the kh*kw taps fold into a single MXU
    contraction instead of kh*kw shallow dots + VPU accumulates.
    """
    c_in = xb.shape[-1]
    taps = []
    for ki in range(kh):
        for kj in range(kw):
            if stride == 1:
                tap = xb[ki:ki + tile_oh, kj:kj + OW, :]
            else:
                # TODO(synk): verify strided lax.slice lowering cost on v5e.
                tap = lax.slice(
                    xb, (ki, kj, 0),
                    (ki + (tile_oh - 1) * stride + 1,
                     kj + (OW - 1) * stride + 1, c_in),
                    (stride, stride, 1))
            taps.append(tap)
    patch = jnp.concatenate(taps, axis=-1)           # (tile_oh, OW, kh*kw*C_in)
    return patch.reshape(tile_oh * OW, kh * kw * c_in)


# ---------------------------------------------------------------------------
# Pass 1: per-(image, row-band) BN partials only (no conv output written).
# ---------------------------------------------------------------------------
def _stats_kernel(x_ref, w_ref, sum_ref, sumsq_ref, *,
                  kh, kw, stride, tile_oh, OW, OH, mask_rows):
    patch = _assemble_patch(x_ref[0], kh=kh, kw=kw, stride=stride,
                            tile_oh=tile_oh, OW=OW)
    acc = jnp.dot(patch, w_ref[...], preferred_element_type=jnp.float32)
    if mask_rows:                                    # static python bool
        base = pl.program_id(1) * tile_oh
        row = lax.broadcasted_iota(jnp.int32, (tile_oh * OW, 1), 0) // OW
        acc = jnp.where(base + row < OH, acc, 0.0)
    s = jnp.sum(acc, axis=0, keepdims=True)          # (1, C_out_p), f32
    ss = jnp.sum(acc * acc, axis=0, keepdims=True)
    sum_ref[...] = s.reshape(sum_ref.shape)
    sumsq_ref[...] = ss.reshape(sumsq_ref.shape)


# ---------------------------------------------------------------------------
# Pass 2: recompute conv (same f32 accumulator), folded BN scale/bias, ReLU6.
# ---------------------------------------------------------------------------
def _conv_bn_relu6_kernel(x_ref, w_ref, scale_ref, bias_ref, out_ref, *,
                          kh, kw, stride, tile_oh, OW, c_out):
    patch = _assemble_patch(x_ref[0], kh=kh, kw=kw, stride=stride,
                            tile_oh=tile_oh, OW=OW)
    acc = jnp.dot(patch, w_ref[...], preferred_element_type=jnp.float32)
    y = jnp.clip(acc * scale_ref[...] + bias_ref[...], 0.0, 6.0)
    out_ref[...] = y[:, :c_out].reshape(out_ref.shape).astype(out_ref.dtype)


def conv_block_forward(x_nchw, w_oihw, gamma, beta, *, stride=1, padding=0,
                       groups=1, eps=1e-5, target_rows=512):
    """ConvBlock forward: relu6(batchnorm_train(conv2d(x, w))), groups=1."""
    N, C_in, H, W = x_nchw.shape
    C_out, C_in_w, kh, kw = w_oihw.shape
    assert groups == 1 and C_in == C_in_w  # TODO(synk): grouped conv (g != 1)
    OH = (H + 2 * padding - kh) // stride + 1
    OW = (W + 2 * padding - kw) // stride + 1
    M = N * OH * OW
    C_out_p = _round_up(C_out, 128)                  # lane-dense MXU output
    KK = kh * kw * C_in

    # Row tiling (bounds per-step VMEM; gives the grid enough parallel steps).
    tile_oh = max(1, min(OH, max(1, target_rows // OW)))
    T = pl.cdiv(OH, tile_oh)
    OH_pad = T * tile_oh
    mask_rows = OH_pad != OH
    band_h = (tile_oh - 1) * stride + kh

    # ---- glue: NHWC bf16, zero-pad, overlapping row bands ------------------
    # TODO(synk): NHWC callers can feed x directly and skip both transposes.
    x = jnp.transpose(x_nchw, (0, 2, 3, 1)).astype(jnp.bfloat16)
    Hp, Wp = H + 2 * padding, W + 2 * padding
    Hp_needed = (OH_pad - 1) * stride + kh
    x = jnp.pad(x, ((0, 0),
                    (padding, padding + max(0, Hp_needed - Hp)),
                    (padding, padding), (0, 0)))
    rows = (jnp.arange(T) * (tile_oh * stride))[:, None] \
        + jnp.arange(band_h)[None, :]
    x_banded = x[:, rows, :, :].reshape(N * T, band_h, Wp, C_in)

    # Weights: (C_out, C_in, kh, kw) -> (kh*kw*C_in, C_out_p) bf16; tap order
    # (ki, kj, c_in) matches _assemble_patch.
    w = jnp.transpose(w_oihw, (2, 3, 1, 0)).reshape(KK, C_out)
    w = jnp.pad(w, ((0, 0), (0, C_out_p - C_out))).astype(jnp.bfloat16)

    x_spec = pl.BlockSpec((1, band_h, Wp, C_in),
                          lambda n, t: (n * T + t, 0, 0, 0))
    w_spec = pl.BlockSpec((KK, C_out_p), lambda n, t: (0, 0))
    cparams = pltpu.CompilerParams(
        dimension_semantics=("parallel", "parallel"),
        vmem_limit_bytes=32 * 1024 * 1024)

    # ---- pass 1: BN partials ----------------------------------------------
    kernel1 = functools.partial(_stats_kernel, kh=kh, kw=kw, stride=stride,
                                tile_oh=tile_oh, OW=OW, OH=OH,
                                mask_rows=mask_rows)
    stat_spec = pl.BlockSpec((1, 1, C_out_p), lambda n, t: (n * T + t, 0, 0))
    sum_p, sumsq_p = pl.pallas_call(
        kernel1,
        out_shape=(jax.ShapeDtypeStruct((N * T, 1, C_out_p), jnp.float32),
                   jax.ShapeDtypeStruct((N * T, 1, C_out_p), jnp.float32)),
        grid=(N, T),
        in_specs=[x_spec, w_spec],
        out_specs=(stat_spec, stat_spec),
        compiler_params=cparams,
    )(x_banded, w)

    # ---- fold BN into per-channel scale/bias (tiny, once) ------------------
    ch_sum = jnp.sum(sum_p, axis=(0, 1))             # (C_out_p,)
    ch_sumsq = jnp.sum(sumsq_p, axis=(0, 1))
    mean = ch_sum / float(M)
    var = jnp.maximum(ch_sumsq / float(M) - mean * mean, 0.0)  # clamp cancel.
    gamma_p = jnp.pad(gamma.astype(jnp.float32), (0, C_out_p - C_out))
    beta_p = jnp.pad(beta.astype(jnp.float32), (0, C_out_p - C_out))
    scale = gamma_p * lax.rsqrt(var + eps)
    bias = beta_p - mean * scale
    scale2 = scale.reshape(1, C_out_p)
    bias2 = bias.reshape(1, C_out_p)

    # ---- pass 2: conv recompute + scale/bias + relu6, final output only ----
    kernel2 = functools.partial(_conv_bn_relu6_kernel, kh=kh, kw=kw,
                                stride=stride, tile_oh=tile_oh, OW=OW,
                                c_out=C_out)
    out = pl.pallas_call(
        kernel2,
        out_shape=jax.ShapeDtypeStruct((N * T, tile_oh * OW, C_out),
                                       jnp.float32),
        grid=(N, T),
        in_specs=[x_spec, w_spec,
                  pl.BlockSpec((1, C_out_p), lambda n, t: (0, 0)),
                  pl.BlockSpec((1, C_out_p), lambda n, t: (0, 0))],
        out_specs=pl.BlockSpec((1, tile_oh * OW, C_out),
                               lambda n, t: (n * T + t, 0, 0)),
        compiler_params=cparams,
    )(x_banded, w, scale2, bias2)

    out = out.reshape(N, OH_pad, OW, C_out)[:, :OH]   # (N, OH, OW, C_out)
    # TODO(synk): NHWC consumers can take `out` directly and skip this transpose.
    return jnp.transpose(out, (0, 3, 1, 2))           # NCHW f32


def _reference(x, w, gamma, beta, stride, padding, eps=1e-5):
    """Pure-JAX reference: Conv2d(bias=False) + train-mode BN + ReLU6."""
    y = lax.conv_general_dilated(
        x.astype(jnp.float32), w.astype(jnp.float32),
        window_strides=(stride, stride),
        padding=[(padding, padding), (padding, padding)],
        dimension_numbers=("NCHW", "OIHW", "NCHW"))
    mean = jnp.mean(y, axis=(0, 2, 3), keepdims=True)
    var = jnp.mean((y - mean) ** 2, axis=(0, 2, 3), keepdims=True)
    yn = (y - mean) / jnp.sqrt(var + eps)
    yn = yn * gamma.reshape(1, -1, 1, 1) + beta.reshape(1, -1, 1, 1)
    return jnp.clip(yn, 0.0, 6.0)


if __name__ == "__main__":
    # ConvBlock(in_c=4, out_c=8, k=3, s=1, p=1)
    in_c, out_c, k, s, p = 4, 8, 3, 1, 1
    key = jax.random.PRNGKey(0)
    kx, kw_, kg, kb = jax.random.split(key, 4)

    x = jax.random.normal(kx, (2, in_c, 16, 16), dtype=jnp.float32)
    w = jax.random.normal(kw_, (out_c, in_c, k, k), dtype=jnp.float32) * 0.1
    gamma = 1.0 + 0.1 * jax.random.normal(kg, (out_c,), dtype=jnp.float32)
    beta = 0.1 * jax.random.normal(kb, (out_c,), dtype=jnp.float32)

    out = conv_block_forward(x, w, gamma, beta, stride=s, padding=p)
    out = jax.block_until_ready(out)

    ref = _reference(x, w, gamma, beta, s, p)
    max_err = float(jnp.max(jnp.abs(out - ref)))
    mean_err = float(jnp.mean(jnp.abs(out - ref)))
    assert out.shape == (2, out_c, 16, 16), out.shape
    # bf16 MXU operands -> tolerance relaxed vs pure-f32 reference.
    assert max_err < 5e-2, f"max mismatch vs reference: {max_err}"
    assert mean_err < 5e-3, f"mean mismatch vs reference: {mean_err}"

    print("KERNEL_OK")
</pallas_src>

<mosaic_0001>
module attributes {stable_mosaic.version = 11 : i64} {
  func.func @_stats_kernel(%arg0: i32, %arg1: i32, %arg2: memref<1x18x18x4xbf16, #tpu.memory_space<vmem>>, %arg3: memref<36x128xbf16, #tpu.memory_space<vmem>>, %arg4: memref<1x1x128xf32, #tpu.memory_space<vmem>>, %arg5: memref<1x1x128xf32, #tpu.memory_space<vmem>>) attributes {dimension_semantics = [#tpu.dimension_semantics<parallel>, #tpu.dimension_semantics<parallel>], iteration_bounds = array<i64: 2, 1>, scalar_prefetch = 0 : i64, scratch_operands = 0 : i64, tpu.core_type = #tpu.core_type<tc>, window_params = [{transform_indices = @transform_0, window_bounds = array<i64: 1, 18, 18, 4>}, {pipeline_mode = #tpu.pipeline_mode<synchronous>, transform_indices = @transform_1, window_bounds = array<i64: 36, 128>}, {transform_indices = @transform_2, window_bounds = array<i64: 1, 1, 128>}, {transform_indices = @transform_3, window_bounds = array<i64: 1, 1, 128>}]} {
    %c0 = arith.constant 0 : index
    %c0_0 = arith.constant 0 : index
    %c0_1 = arith.constant 0 : index
    %c0_2 = arith.constant 0 : index
    %0 = vector.load %arg2[%c0, %c0_0, %c0_1, %c0_2] : memref<1x18x18x4xbf16, #tpu.memory_space<vmem>>, vector<1x18x18x4xbf16>
    %1 = vector.shape_cast %0 : vector<1x18x18x4xbf16> to vector<18x18x4xbf16>
    %2 = vector.extract_strided_slice %1 {offsets = [0, 0, 0], sizes = [16, 16, 4], strides = [1, 1, 1]} : vector<18x18x4xbf16> to vector<16x16x4xbf16>
    %3 = vector.extract_strided_slice %1 {offsets = [0, 1, 0], sizes = [16, 16, 4], strides = [1, 1, 1]} : vector<18x18x4xbf16> to vector<16x16x4xbf16>
    %4 = vector.extract_strided_slice %1 {offsets = [0, 2, 0], sizes = [16, 16, 4], strides = [1, 1, 1]} : vector<18x18x4xbf16> to vector<16x16x4xbf16>
    %5 = vector.extract_strided_slice %1 {offsets = [1, 0, 0], sizes = [16, 16, 4], strides = [1, 1, 1]} : vector<18x18x4xbf16> to vector<16x16x4xbf16>
    %6 = vector.extract_strided_slice %1 {offsets = [1, 1, 0], sizes = [16, 16, 4], strides = [1, 1, 1]} : vector<18x18x4xbf16> to vector<16x16x4xbf16>
    %7 = vector.extract_strided_slice %1 {offsets = [1, 2, 0], sizes = [16, 16, 4], strides = [1, 1, 1]} : vector<18x18x4xbf16> to vector<16x16x4xbf16>
    %8 = vector.extract_strided_slice %1 {offsets = [2, 0, 0], sizes = [16, 16, 4], strides = [1, 1, 1]} : vector<18x18x4xbf16> to vector<16x16x4xbf16>
    %9 = vector.extract_strided_slice %1 {offsets = [2, 1, 0], sizes = [16, 16, 4], strides = [1, 1, 1]} : vector<18x18x4xbf16> to vector<16x16x4xbf16>
    %10 = vector.extract_strided_slice %1 {offsets = [2, 2, 0], sizes = [16, 16, 4], strides = [1, 1, 1]} : vector<18x18x4xbf16> to vector<16x16x4xbf16>
    %11 = tpu.concatenate %2, %3, %4, %5, %6, %7, %8, %9, %10 in 2 : vector<16x16x4xbf16>, vector<16x16x4xbf16>, vector<16x16x4xbf16>, vector<16x16x4xbf16>, vector<16x16x4xbf16>, vector<16x16x4xbf16>, vector<16x16x4xbf16>, vector<16x16x4xbf16>, vector<16x16x4xbf16> -> vector<16x16x36xbf16>
    %12 = vector.shape_cast %11 : vector<16x16x36xbf16> to vector<256x36xbf16>
    %c0_3 = arith.constant 0 : index
    %c0_4 = arith.constant 0 : index
    %13 = vector.load %arg3[%c0_3, %c0_4] : memref<36x128xbf16, #tpu.memory_space<vmem>>, vector<36x128xbf16>
    %cst = arith.constant dense<0.000000e+00> : vector<256x128xf32>
    %14 = tpu.matmul %12, %13, %cst {dimension_numbers = #tpu.dot_dimension_numbers<[1], [0], [0], [1], [0, 0, 1, 1], [], []>} : vector<256x36xbf16>, vector<36x128xbf16>, vector<256x128xf32> -> vector<256x128xf32>
    %cst_5 = arith.constant dense<0.000000e+00> : vector<128xf32>
    %15 = vector.multi_reduction <add>, %14, %cst_5 [0] : vector<256x128xf32> to vector<128xf32>
    %16 = vector.shape_cast %15 : vector<128xf32> to vector<1x128xf32>
    %17 = arith.mulf %14, %14 : vector<256x128xf32>
    %cst_6 = arith.constant dense<0.000000e+00> : vector<128xf32>
    %18 = vector.multi_reduction <add>, %17, %cst_6 [0] : vector<256x128xf32> to vector<128xf32>
    %19 = vector.shape_cast %18 : vector<128xf32> to vector<1x128xf32>
    %20 = vector.shape_cast %16 : vector<1x128xf32> to vector<1x1x128xf32>
    %c0_7 = arith.constant 0 : index
    %c0_8 = arith.constant 0 : index
    %c0_9 = arith.constant 0 : index
    %21 = vector.load %arg4[%c0_7, %c0_8, %c0_9] : memref<1x1x128xf32, #tpu.memory_space<vmem>>, vector<1x1x128xf32>
    tpu.vector_store %arg4[%c0_7, %c0_8, %c0_9], %20 {strides = array<i32>} : memref<1x1x128xf32, #tpu.memory_space<vmem>>, vector<1x1x128xf32>,
    %22 = vector.shape_cast %19 : vector<1x128xf32> to vector<1x1x128xf32>
    %c0_10 = arith.constant 0 : index
    %c0_11 = arith.constant 0 : index
    %c0_12 = arith.constant 0 : index
    %23 = vector.load %arg5[%c0_10, %c0_11, %c0_12] : memref<1x1x128xf32, #tpu.memory_space<vmem>>, vector<1x1x128xf32>
    tpu.vector_store %arg5[%c0_10, %c0_11, %c0_12], %22 {strides = array<i32>} : memref<1x1x128xf32, #tpu.memory_space<vmem>>, vector<1x1x128xf32>,
    return
  }
  func.func @transform_0(%arg0: i32, %arg1: i32) -> (i32, i32, i32, i32) {
    %c1_i32 = arith.constant 1 : i32
    %0 = arith.muli %arg0, %c1_i32 : i32
    %1 = arith.addi %0, %arg1 : i32
    %c0_i32 = arith.constant 0 : i32
    %c0_i32_0 = arith.constant 0 : i32
    %c0_i32_1 = arith.constant 0 : i32
    %c0_i32_2 = arith.constant 0 : i32
    return %1, %c0_i32, %c0_i32_0, %c0_i32_1 : i32, i32, i32, i32
  }
  func.func @transform_1(%arg0: i32, %arg1: i32) -> (i32, i32) {
    %c0_i32 = arith.constant 0 : i32
    %c0_i32_0 = arith.constant 0 : i32
    %c0_i32_1 = arith.constant 0 : i32
    return %c0_i32, %c0_i32_0 : i32, i32
  }
  func.func @transform_2(%arg0: i32, %arg1: i32) -> (i32, i32, i32) {
    %c1_i32 = arith.constant 1 : i32
    %0 = arith.muli %arg0, %c1_i32 : i32
    %1 = arith.addi %0, %arg1 : i32
    %c0_i32 = arith.constant 0 : i32
    %c0_i32_0 = arith.constant 0 : i32
    %c0_i32_1 = arith.constant 0 : i32
    return %1, %c0_i32, %c0_i32_0 : i32, i32, i32
  }
  func.func @transform_3(%arg0: i32, %arg1: i32) -> (i32, i32, i32) {
    %c1_i32 = arith.constant 1 : i32
    %0 = arith.muli %arg0, %c1_i32 : i32
    %1 = arith.addi %0, %arg1 : i32
    %c0_i32 = arith.constant 0 : i32
    %c0_i32_0 = arith.constant 0 : i32
    %c0_i32_1 = arith.constant 0 : i32
    return %1, %c0_i32, %c0_i32_0 : i32, i32, i32
  }
}

</mosaic_0001>

<llo_original>
// kernel: tpu_custom_call.1
$region0: #{tpu_custom_call.1}
  #allocation0 [shape = 'u32[]', space=smem, size = 0x4, offset = 0x4, fixed_abs, tag = 'smem constant byte address 0x4 - core index']
  #allocation1 [shape = 'u32[144,128]{1,0:T(1,128)}', space=vmem, size = 0x12000, scoped, tag = 'internal scratch']
  %s0 = inlined_call_operand.vmem [shape: bf16[2,18,18,4], index: 0, kind: input, shape index: {}]
  %s1 = inlined_call_operand.vmem [shape: bf16[36,128], index: 1, kind: input, shape index: {}]
  %s2 = inlined_call_operand.hbm [shape: f32[2,1,128], index: 2, kind: output, shape index: {0}]
  %s3 = inlined_call_operand.hbm [shape: f32[2,1,128], index: 3, kind: output, shape index: {1}]
  %4 = xla_tuple %s2, %s3
  %s5 = sld [smem:[#allocation0]]
  $region49: #{tpu_custom_call.1} parent=0
    _
  %s7 = ssub.s32 1, %s5
  %s8 = scalar_select 0, %s7, %s5
  $region1: #{tpu_custom_call.1} parent=0
    #allocation2 [shape = 'u8[1024]{0}', space=vmem, size = 0x400, scoped, tag = 'output window, operand 0']
    #allocation3 [shape = 's32[2]{0}', space=sflag, size = 0x8, scoped, tag = 'scoped memory for tpu_custom_call.1']
    #allocation4 [shape = 'u8[1024]{0}', space=vmem, size = 0x400, scoped, tag = 'output window, operand 1']
    #allocation5 [shape = 's32[2]{0}', space=sflag, size = 0x8, scoped, tag = 'scoped memory for tpu_custom_call.1']
    %9 = vsyncpa [#allocation3], 0
    %s10 = scalar_lea.sflag [#allocation3], 1
    %11 = vsyncpa %s10, 0
    %12 = vsyncpa [#allocation5], 0
    %s13 = scalar_lea.sflag [#allocation5], 1
    %14 = vsyncpa %s13, 0
    loop: start=0, step=1, limit=4
    $region2: #{tpu_custom_call.1} parent=1 // loop_pre_header
      _
    $region3: #{tpu_custom_call.1} parent=1 // loop_header
      %s16 = sphi 0, %s20
      %p17 = scmp.ge.s32.totalorder %s16, 4
      %s23 = sphi 0, %s35
      %s24 = sphi 0, %s31
      %s25 = sphi 0, %s23
      %s26 = sphi 0, %s24
      %s27 = sphi 0, %s25
      %s28 = sphi 0, %s26
      %s40 = sphi 0, %s42
      %s43 = sphi 0, %s40
      %s44 = sphi 0, %s43
      %s60 = sphi 0, %s44
      %s64 = sphi 0, %s64
      %s66 = sphi 0, %s64
      %s67 = sphi 0, %s66
      %s81 = sphi 0, %s67
      %s89 = sphi 0, %s91
      %s92 = sphi 0, %s89
      %s93 = sphi 0, %s92
      %s109 = sphi 0, %s93
      %s117 = sphi 0, %s119
      %s120 = sphi 0, %s117
      %s121 = sphi 0, %s120
      %s137 = sphi 0, %s121
    $region4: #{tpu_custom_call.1} parent=1 // loop_header_branch
      %19 = sbr.rel (%p17) target = $region8
    $region5: #{tpu_custom_call.1} parent=1 // loop_body
      %s21 = ssub.s32 %s16, 1
      %s22 = ssub.s32 %s16, 2
      %s29 = sadd.s32 1, %s24
      %p30 = scmp.ge.s32.totalorder %s29, 1
      %s31 = scalar_select %p30, 0, %s29
      %s32 = sadd.s32 1, %s23
      %s33 = scalar_select %p30, %s32, %s23
      %p34 = scmp.ge.s32.totalorder %s33, 2
      %s35 = scalar_select %p34, 0, %s33
      %s36 = sadd.s32 %s23, %s24
      %s37 = sadd.s32 %s35, %s31
      %s38 = ssub.s32 %s36, %s37
      %p39 = scmp.eq.s32.totalorder %s38, 0
      %s41 = sadd.s32 %s40, 1
      %s42 = scalar_select %p39, %s40, %s41
      %p45 = pneg %p39
      %p46 = scmp.eq.s32.totalorder %s16, 1
      %p47 = por %p45, %p46
      %p48 = scmp.ne.s32.totalorder %s40, %s43
      %p49 = scmp.eq.s32.totalorder %s16, 0
      %p50 = por %p48, %p49
      %p51 = scmp.ne.s32.totalorder %s40, %s43
      %p52 = scmp.eq.s32.totalorder %s21, 1
      %p53 = por %p51, %p52
      %p54 = scmp.ne.s32.totalorder %s43, %s44
      %p55 = scmp.eq.s32.totalorder %s21, 0
      %p56 = por %p54, %p55
      %p57 = scmp.ne.s32.totalorder %s43, %s44
      %p58 = scmp.eq.s32.totalorder %s22, 1
      %p59 = por %p57, %p58
      %p61 = scmp.ne.s32.totalorder %s44, %s60
      %p62 = scmp.eq.s32.totalorder %s22, 0
      %p63 = por %p61, %p62
      %s65 = sadd.s32 %s64, 1
      %p68 = scmp.eq.s32.totalorder %s16, 1
      %p69 = scmp.ne.s32.totalorder %s64, %s66
      %p70 = scmp.eq.s32.totalorder %s16, 0
      %p71 = por %p69, %p70
      %p72 = scmp.ne.s32.totalorder %s64, %s66
      %p73 = scmp.eq.s32.totalorder %s21, 1
      %p74 = por %p72, %p73
      %p75 = scmp.ne.s32.totalorder %s66, %s67
      %p76 = scmp.eq.s32.totalorder %s21, 0
      %p77 = por %p75, %p76
      %p78 = scmp.ne.s32.totalorder %s66, %s67
      %p79 = scmp.eq.s32.totalorder %s22, 1
      %p80 = por %p78, %p79
      %p82 = scmp.ne.s32.totalorder %s67, %s81
      %p83 = scmp.eq.s32.totalorder %s22, 0
      %p84 = por %p82, %p83
      %s85 = sadd.s32 %s23, %s24
      %s86 = sadd.s32 %s35, %s31
      %s87 = ssub.s32 %s85, %s86
      %p88 = scmp.eq.s32.totalorder %s87, 0
      %s90 = sadd.s32 %s89, 1
      %s91 = scalar_select %p88, %s89, %s90
      %p94 = pneg %p88
      %p95 = scmp.eq.s32.totalorder %s16, 1
      %p96 = por %p94, %p95
      %p97 = scmp.ne.s32.totalorder %s89, %s92
      %p98 = scmp.eq.s32.totalorder %s16, 0
      %p99 = por %p97, %p98
      %p100 = scmp.ne.s32.totalorder %s89, %s92
      %p101 = scmp.eq.s32.totalorder %s21, 1
      %p102 = por %p100, %p101
      %p103 = scmp.ne.s32.totalorder %s92, %s93
      %p104 = scmp.eq.s32.totalorder %s21, 0
      %p105 = por %p103, %p104
      %p106 = scmp.ne.s32.totalorder %s92, %s93
      %p107 = scmp.eq.s32.totalorder %s22, 1
      %p108 = por %p106, %p107
      %p110 = scmp.ne.s32.totalorder %s93, %s109
      %p111 = scmp.eq.s32.totalorder %s22, 0
      %p112 = por %p110, %p111
      %s113 = sadd.s32 %s23, %s24
      %s114 = sadd.s32 %s35, %s31
      %s115 = ssub.s32 %s113, %s114
      %p116 = scmp.eq.s32.totalorder %s115, 0
      %s118 = sadd.s32 %s117, 1
      %s119 = scalar_select %p116, %s117, %s118
      %p122 = pneg %p116
      %p123 = scmp.eq.s32.totalorder %s16, 1
      %p124 = por %p122, %p123
      %p125 = scmp.ne.s32.totalorder %s117, %s120
      %p126 = scmp.eq.s32.totalorder %s16, 0
      %p127 = por %p125, %p126
      %p128 = scmp.ne.s32.totalorder %s117, %s120
      %p129 = scmp.eq.s32.totalorder %s21, 1
      %p130 = por %p128, %p129
      %p131 = scmp.ne.s32.totalorder %s120, %s121
      %p132 = scmp.eq.s32.totalorder %s21, 0
      %p133 = por %p131, %p132
      %p134 = scmp.ne.s32.totalorder %s120, %s121
      %p135 = scmp.eq.s32.totalorder %s22, 1
      %p136 = por %p134, %p135
      %p138 = scmp.ne.s32.totalorder %s121, %s137
      %p139 = scmp.eq.s32.totalorder %s22, 0
      %p140 = por %p138, %p139
      %p141 = scmp.le.s32.totalorder 1, %s16
      %p142 = scmp.lt.s32.totalorder %s16, 3
      %p143 = pnand %p141, %p142
      %p144 = pneg %p143
      // Predicated region
      $region9: #{tpu_custom_call.1} parent=5 // pred_check
        _
      $region10: #{tpu_custom_call.1} parent=5 // pred_check_branch
        %146 = sbr.rel (%p143) target = $region12
      $region11: #{tpu_custom_call.1} parent=5 // pred_region
        %s147 = ssub.s32 %s16, 1
        // Predicated region
        $region13: #{tpu_custom_call.1} parent=11 // pred_check
          %p148 = pneg %p77
        $region14: #{tpu_custom_call.1} parent=11 // pred_check_branch
          %150 = sbr.rel (%p148) target = $region16
        $region15: #{tpu_custom_call.1} parent=11 // pred_region
          _
        $region16: #{tpu_custom_call.1} parent=11 // pred_fallthru
          _
      $region12: #{tpu_custom_call.1} parent=5 // pred_fallthru
        _
      %p151 = scmp.lt.s32.totalorder %s16, 2
      // Predicated region
      $region17: #{tpu_custom_call.1} parent=5 // pred_check
        %p152 = pneg %p151
      $region18: #{tpu_custom_call.1} parent=5 // pred_check_branch
        %154 = sbr.rel (%p152) target = $region20
      $region19: #{tpu_custom_call.1} parent=5 // pred_region
        // Predicated region
        $region21: #{tpu_custom_call.1} parent=19 // pred_check
          %p155 = pneg %p50
        $region22: #{tpu_custom_call.1} parent=19 // pred_check_branch
          %157 = sbr.rel (%p155) target = $region24
        $region23: #{tpu_custom_call.1} parent=19 // pred_region
          %s158 = sadd.s32 %s23, %s24
          %p159 = scmp.lt.s32.totalorder %s158, 1
          %s160 = scalar_select %p159, %s158, 1
          %s161 = smul.addr %s160, 54
          %s162 = smul.addr %s161, 4
          %s163 = scalar_lea.vmem %s0, %s162
          %s164 = sadd.s32 %s23, %s24
        $region24: #{tpu_custom_call.1} parent=19 // pred_fallthru
          _
      $region20: #{tpu_custom_call.1} parent=5 // pred_fallthru
        _
      %p165 = scmp.le.s32.totalorder 1, %s16
      %p166 = scmp.lt.s32.totalorder %s16, 3
      %p167 = pnand %p165, %p166
      %p168 = pneg %p167
      // Predicated region
      $region25: #{tpu_custom_call.1} parent=5 // pred_check
        _
      $region26: #{tpu_custom_call.1} parent=5 // pred_check_branch
        %170 = sbr.rel (%p167) target = $region28
      $region27: #{tpu_custom_call.1} parent=5 // pred_region
        %s171 = ssub.s32 %s16, 1
        %s172 = sadd.s32 %s25, %s26
        %p173 = scmp.lt.s32.totalorder %s172, 1
        %s174 = scalar_select %p173, %s172, 1
        %s175 = smul.addr %s174, 54
        %s176 = smul.addr %s175, 4
        %s177 = scalar_lea.vmem %s0, %s176
        %p178 = pneg %p56
        %p179 = pneg %p53
        %p180 = pneg %p77
        %p181 = pneg %p74
        %p182 = pneg %p105
        %p183 = pneg %p102
        %s184 = sand.u32 %s92, 1
        %s185 = scalar_lea.sflag [#allocation3], %s184
        %s186 = sand.u32 %s92, 1
        %s187 = scalar_lea.vmem [#allocation2], %s186
        %p188 = pneg %p133
        %p189 = pneg %p130
        %s190 = sand.u32 %s120, 1
        %s191 = scalar_lea.sflag [#allocation5], %s190
        %s192 = sand.u32 %s120, 1
        %s193 = scalar_lea.vmem [#allocation4], %s192
        %s194 = sadd.s32 %s25, %s26
        %p195 = scmp.lt.s32.totalorder %s194, 1
        %s196 = scalar_select %p195, %s194, 1
        %s197 = smul.addr %s196, 54
        %s198 = smul.addr %s197, 4
        %s199 = scalar_lea.vmem %s0, %s198
        %s200 = sadd.s32 %s25, %s26
        %s201 = sadd.s32 %s25, %s26
        %s202 = sadd.s32 %s25, %s26
        %v204 = vld [vmem:[%s199] sm:$0xf]
        %v205 = vld [vmem:[%s199 + $0x4] sm:$0xf]
        %v206 = vld [vmem:[%s199 + $0x8] sm:$0x1]
        %v207 = vld [vmem:[%s199 + $0xc] sm:$0xf]
        %v208 = vld [vmem:[%s199 + $0x10] sm:$0xf]
        %v209 = vld [vmem:[%s199 + $0x14] sm:$0x1]
        %v210 = vld [vmem:[%s199 + $0x18] sm:$0xf]
        %v211 = vld [vmem:[%s199 + $0x1c] sm:$0xf]
        %v212 = vld [vmem:[%s199 + $0x20] sm:$0x1]
        %v213 = vld [vmem:[%s199 + $0x24] sm:$0xf]
        %v214 = vld [vmem:[%s199 + $0x28] sm:$0xf]
        %v215 = vld [vmem:[%s199 + $0x2c] sm:$0x1]
        %v216 = vld [vmem:[%s199 + $0x30] sm:$0xf]
        %v217 = vld [vmem:[%s199 + $0x34] sm:$0xf]
        %v218 = vld [vmem:[%s199 + $0x38] sm:$0x1]
        %v219 = vld [vmem:[%s199 + $0x3c] sm:$0xf]
        %v220 = vld [vmem:[%s199 + $0x40] sm:$0xf]
        %v221 = vld [vmem:[%s199 + $0x44] sm:$0x1]
        %v222 = vld [vmem:[%s199 + $0x48] sm:$0xf]
        %v223 = vld [vmem:[%s199 + $0x4c] sm:$0xf]
        %v224 = vld [vmem:[%s199 + $0x50] sm:$0x1]
        %v225 = vld [vmem:[%s199 + $0x54] sm:$0xf]
        %v226 = vld [vmem:[%s199 + $0x58] sm:$0xf]
        %v227 = vld [vmem:[%s199 + $0x5c] sm:$0x1]
        %v228 = vld [vmem:[%s199 + $0x60] sm:$0xf]
        %v229 = vld [vmem:[%s199 + $0x64] sm:$0xf]
        %v230 = vld [vmem:[%s199 + $0x68] sm:$0x1]
        %v231 = vld [vmem:[%s199 + $0x6c] sm:$0xf]
        %v232 = vld [vmem:[%s199 + $0x70] sm:$0xf]
        %v233 = vld [vmem:[%s199 + $0x74] sm:$0x1]
        %v234 = vld [vmem:[%s199 + $0x78] sm:$0xf]
        %v235 = vld [vmem:[%s199 + $0x7c] sm:$0xf]
        %v236 = vld [vmem:[%s199 + $0x80] sm:$0x1]
        %v237 = vld [vmem:[%s199 + $0x84] sm:$0xf]
        %v238 = vld [vmem:[%s199 + $0x88] sm:$0xf]
        %v239 = vld [vmem:[%s199 + $0x8c] sm:$0x1]
        %v240 = vld [vmem:[%s199 + $0x90] sm:$0xf]
        %v241 = vld [vmem:[%s199 + $0x94] sm:$0xf]
        %v242 = vld [vmem:[%s199 + $0x98] sm:$0x1]
        %v243 = vld [vmem:[%s199 + $0x9c] sm:$0xf]
        %v244 = vld [vmem:[%s199 + $0xa0] sm:$0xf]
        %v245 = vld [vmem:[%s199 + $0xa4] sm:$0x1]
        %v246 = vld [vmem:[%s199 + $0xa8] sm:$0xf]
        %v247 = vld [vmem:[%s199 + $0xac] sm:$0xf]
        %v248 = vld [vmem:[%s199 + $0xb0] sm:$0x1]
        %v249 = vld [vmem:[%s199 + $0xb4] sm:$0xf]
        %v250 = vld [vmem:[%s199 + $0xb8] sm:$0xf]
        %v251 = vld [vmem:[%s199 + $0xbc] sm:$0x1]
        %v252 = vld [vmem:[%s199 + $0xc0] sm:$0xf]
        %v253 = vld [vmem:[%s199 + $0xc4] sm:$0xf]
        %v254 = vld [vmem:[%s199 + $0xc8] sm:$0x1]
        %v255 = vld [vmem:[%s199 + $0xcc] sm:$0xf]
        %v256 = vld [vmem:[%s199 + $0xd0] sm:$0xf]
        %v257 = vld [vmem:[%s199 + $0xd4] sm:$0x1]
        %v290 = vunpack.c.l.b16 %v204
        %v291 = vunpack.c.l.b16 %v205
        %v292 = vunpack.c.l.b16 %v207
        %v293 = vunpack.c.l.b16 %v208
        %v294 = vunpack.c.l.b16 %v210
        %v295 = vunpack.c.l.b16 %v211
        %v296 = vunpack.c.l.b16 %v213
        %v297 = vunpack.c.l.b16 %v214
        %v298 = vunpack.c.l.b16 %v216
        %v299 = vunpack.c.l.b16 %v217
        %v300 = vunpack.c.l.b16 %v219
        %v301 = vunpack.c.l.b16 %v220
        %v302 = vunpack.c.l.b16 %v222
        %v303 = vunpack.c.l.b16 %v223
        %v304 = vunpack.c.l.b16 %v225
        %v305 = vunpack.c.l.b16 %v226
        %v306 = vunpack.c.l.b16 %v228
        %v307 = vunpack.c.l.b16 %v229
        %v308 = vunpack.c.l.b16 %v231
        %v309 = vunpack.c.l.b16 %v232
        %v310 = vunpack.c.l.b16 %v234
        %v311 = vunpack.c.l.b16 %v235
        %v312 = vunpack.c.l.b16 %v237
        %v313 = vunpack.c.l.b16 %v238
        %v314 = vunpack.c.l.b16 %v240
        %v315 = vunpack.c.l.b16 %v241
        %v316 = vunpack.c.l.b16 %v243
        %v317 = vunpack.c.l.b16 %v244
        %v318 = vunpack.c.l.b16 %v246
        %v319 = vunpack.c.l.b16 %v247
        %v320 = vunpack.c.l.b16 %v249
        %v321 = vunpack.c.l.b16 %v250
        %v322 = vpack.c.b16 %v291, %v290
        %v323 = vpack.c.b16 %v293, %v292
        %v324 = vpack.c.b16 %v295, %v294
        %v325 = vpack.c.b16 %v297, %v296
        %v326 = vpack.c.b16 %v299, %v298
        %v327 = vpack.c.b16 %v301, %v300
        %v328 = vpack.c.b16 %v303, %v302
        %v329 = vpack.c.b16 %v305, %v304
        %v330 = vpack.c.b16 %v307, %v306
        %v331 = vpack.c.b16 %v309, %v308
        %v332 = vpack.c.b16 %v311, %v310
        %v333 = vpack.c.b16 %v313, %v312
        %v334 = vpack.c.b16 %v315, %v314
        %v335 = vpack.c.b16 %v317, %v316
        %v336 = vpack.c.b16 %v319, %v318
        %v337 = vpack.c.b16 %v321, %v320
        %v354 = vunpack.c.l.b16 %v206
        %v355 = vunpack.c.l.b16 %v209
        %v356 = vunpack.c.l.b16 %v212
        %v357 = vunpack.c.l.b16 %v215
        %v358 = vunpack.c.l.b16 %v218
        %v359 = vunpack.c.l.b16 %v221
        %v360 = vunpack.c.l.b16 %v224
        %v361 = vunpack.c.l.b16 %v227
        %v362 = vunpack.c.l.b16 %v230
        %v363 = vunpack.c.l.b16 %v233
        %v364 = vunpack.c.l.b16 %v236
        %v365 = vunpack.c.l.b16 %v239
        %v366 = vunpack.c.l.b16 %v242
        %v367 = vunpack.c.l.b16 %v245
        %v368 = vunpack.c.l.b16 %v248
        %v369 = vunpack.c.l.b16 %v251
        %v370 = vpack.c.b16 %v354, %v354
        %v371 = vpack.c.b16 %v355, %v355
        %v372 = vpack.c.b16 %v356, %v356
        %v373 = vpack.c.b16 %v357, %v357
        %v374 = vpack.c.b16 %v358, %v358
        %v375 = vpack.c.b16 %v359, %v359
        %v376 = vpack.c.b16 %v360, %v360
        %v377 = vpack.c.b16 %v361, %v361
        %v378 = vpack.c.b16 %v362, %v362
        %v379 = vpack.c.b16 %v363, %v363
        %v380 = vpack.c.b16 %v364, %v364
        %v381 = vpack.c.b16 %v365, %v365
        %v382 = vpack.c.b16 %v366, %v366
        %v383 = vpack.c.b16 %v367, %v367
        %v384 = vpack.c.b16 %v368, %v368
        %v385 = vpack.c.b16 %v369, %v369
        %vm386 = vsmask.f32 7424
        %v388 = vshrl.u32 %v322, 16
        %v390 = vshll.u32 %v322, 16
        %v392 = vrot.slane %v390, 1
        %v393 = vor.u32 %v388, %v392
        %v395 = vshll.u32 %v370, 16
        %v397 = vrot.slane %v395, 1
        %v398 = vsel %vm386, %v393, %v397
        %v400 = vshrl.u32 %v323, 16
        %v402 = vshll.u32 %v323, 16
        %v404 = vrot.slane %v402, 1
        %v405 = vor.u32 %v400, %v404
        %v407 = vshll.u32 %v371, 16
        %v409 = vrot.slane %v407, 1
        %v410 = vsel %vm386, %v405, %v409
        %v412 = vshrl.u32 %v324, 16
        %v414 = vshll.u32 %v324, 16
        %v416 = vrot.slane %v414, 1
        %v417 = vor.u32 %v412, %v416
        %v419 = vshll.u32 %v372, 16
        %v421 = vrot.slane %v419, 1
        %v422 = vsel %vm386, %v417, %v421
        %v424 = vshrl.u32 %v325, 16
        %v426 = vshll.u32 %v325, 16
        %v428 = vrot.slane %v426, 1
        %v429 = vor.u32 %v424, %v428
        %v431 = vshll.u32 %v373, 16
        %v433 = vrot.slane %v431, 1
        %v434 = vsel %vm386, %v429, %v433
        %v436 = vshrl.u32 %v326, 16
        %v438 = vshll.u32 %v326, 16
        %v440 = vrot.slane %v438, 1
        %v441 = vor.u32 %v436, %v440
        %v443 = vshll.u32 %v374, 16
        %v445 = vrot.slane %v443, 1
        %v446 = vsel %vm386, %v441, %v445
        %v448 = vshrl.u32 %v327, 16
        %v450 = vshll.u32 %v327, 16
        %v452 = vrot.slane %v450, 1
        %v453 = vor.u32 %v448, %v452
        %v455 = vshll.u32 %v375, 16
        %v457 = vrot.slane %v455, 1
        %v458 = vsel %vm386, %v453, %v457
        %v460 = vshrl.u32 %v328, 16
        %v462 = vshll.u32 %v328, 16
        %v464 = vrot.slane %v462, 1
        %v465 = vor.u32 %v460, %v464
        %v467 = vshll.u32 %v376, 16
        %v469 = vrot.slane %v467, 1
        %v470 = vsel %vm386, %v465, %v469
        %v472 = vshrl.u32 %v329, 16
        %v474 = vshll.u32 %v329, 16
        %v476 = vrot.slane %v474, 1
        %v477 = vor.u32 %v472, %v476
        %v479 = vshll.u32 %v377, 16
        %v481 = vrot.slane %v479, 1
        %v482 = vsel %vm386, %v477, %v481
        %v484 = vshrl.u32 %v330, 16
        %v486 = vshll.u32 %v330, 16
        %v488 = vrot.slane %v486, 1
        %v489 = vor.u32 %v484, %v488
        %v491 = vshll.u32 %v378, 16
        %v493 = vrot.slane %v491, 1
        %v494 = vsel %vm386, %v489, %v493
        %v496 = vshrl.u32 %v331, 16
        %v498 = vshll.u32 %v331, 16
        %v500 = vrot.slane %v498, 1
        %v501 = vor.u32 %v496, %v500
        %v503 = vshll.u32 %v379, 16
        %v505 = vrot.slane %v503, 1
        %v506 = vsel %vm386, %v501, %v505
        %v508 = vshrl.u32 %v332, 16
        %v510 = vshll.u32 %v332, 16
        %v512 = vrot.slane %v510, 1
        %v513 = vor.u32 %v508, %v512
        %v515 = vshll.u32 %v380, 16
        %v517 = vrot.slane %v515, 1
        %v518 = vsel %vm386, %v513, %v517
        %v520 = vshrl.u32 %v333, 16
        %v522 = vshll.u32 %v333, 16
        %v524 = vrot.slane %v522, 1
        %v525 = vor.u32 %v520, %v524
        %v527 = vshll.u32 %v381, 16
        %v529 = vrot.slane %v527, 1
        %v530 = vsel %vm386, %v525, %v529
        %v532 = vshrl.u32 %v334, 16
        %v534 = vshll.u32 %v334, 16
        %v536 = vrot.slane %v534, 1
        %v537 = vor.u32 %v532, %v536
        %v539 = vshll.u32 %v382, 16
        %v541 = vrot.slane %v539, 1
        %v542 = vsel %vm386, %v537, %v541
        %v544 = vshrl.u32 %v335, 16
        %v546 = vshll.u32 %v335, 16
        %v548 = vrot.slane %v546, 1
        %v549 = vor.u32 %v544, %v548
        %v551 = vshll.u32 %v383, 16
        %v553 = vrot.slane %v551, 1
        %v554 = vsel %vm386, %v549, %v553
        %v556 = vshrl.u32 %v336, 16
        %v558 = vshll.u32 %v336, 16
        %v560 = vrot.slane %v558, 1
        %v561 = vor.u32 %v556, %v560
        %v563 = vshll.u32 %v384, 16
        %v565 = vrot.slane %v563, 1
        %v566 = vsel %vm386, %v561, %v565
        %v568 = vshrl.u32 %v337, 16
        %v570 = vshll.u32 %v337, 16
        %v572 = vrot.slane %v570, 1
        %v573 = vor.u32 %v568, %v572
        %v575 = vshll.u32 %v385, 16
        %v577 = vrot.slane %v575, 1
        %v578 = vsel %vm386, %v573, %v577
        %579 = vrot.lane.b32.xlu0 %v398, 4
        %v580 = vpop.permute.xlu0 %579
        %581 = vrot.lane.b32.xlu0 %v410, 4
        %v582 = vpop.permute.xlu0 %581
        %583 = vrot.lane.b32.xlu0 %v422, 4
        %v584 = vpop.permute.xlu0 %583
        %585 = vrot.lane.b32.xlu0 %v434, 4
        %v586 = vpop.permute.xlu0 %585
        %587 = vrot.lane.b32.xlu0 %v446, 4
        %v588 = vpop.permute.xlu0 %587
        %589 = vrot.lane.b32.xlu0 %v458, 4
        %v590 = vpop.permute.xlu0 %589
        %591 = vrot.lane.b32.xlu0 %v470, 4
        %v592 = vpop.permute.xlu0 %591
        %593 = vrot.lane.b32.xlu0 %v482, 4
        %v594 = vpop.permute.xlu0 %593
        %595 = vrot.lane.b32.xlu0 %v494, 4
        %v596 = vpop.permute.xlu0 %595
        %597 = vrot.lane.b32.xlu0 %v506, 4
        %v598 = vpop.permute.xlu0 %597
        %599 = vrot.lane.b32.xlu0 %v518, 4
        %v600 = vpop.permute.xlu0 %599
        %601 = vrot.lane.b32.xlu0 %v530, 4
        %v602 = vpop.permute.xlu0 %601
        %603 = vrot.lane.b32.xlu0 %v542, 4
        %v604 = vpop.permute.xlu0 %603
        %605 = vrot.lane.b32.xlu0 %v554, 4
        %v606 = vpop.permute.xlu0 %605
        %607 = vrot.lane.b32.xlu0 %v566, 4
        %v608 = vpop.permute.xlu0 %607
        %609 = vrot.lane.b32.xlu0 %v578, 4
        %v610 = vpop.permute.xlu0 %609
        %vm611 = vcmask 1046528
        %v612 = vrot.slane %v322, 1
        %v613 = vrot.slane %v370, 1
        %v614 = vsel %vm611, %v612, %v613
        %v615 = vrot.slane %v323, 1
        %v616 = vrot.slane %v371, 1
        %v617 = vsel %vm611, %v615, %v616
        %v618 = vrot.slane %v324, 1
        %v619 = vrot.slane %v372, 1
        %v620 = vsel %vm611, %v618, %v619
        %v621 = vrot.slane %v325, 1
        %v622 = vrot.slane %v373, 1
        %v623 = vsel %vm611, %v621, %v622
        %v624 = vrot.slane %v326, 1
        %v625 = vrot.slane %v374, 1
        %v626 = vsel %vm611, %v624, %v625
        %v627 = vrot.slane %v327, 1
        %v628 = vrot.slane %v375, 1
        %v629 = vsel %vm611, %v627, %v628
        %v630 = vrot.slane %v328, 1
        %v631 = vrot.slane %v376, 1
        %v632 = vsel %vm611, %v630, %v631
        %v633 = vrot.slane %v329, 1
        %v634 = vrot.slane %v377, 1
        %v635 = vsel %vm611, %v633, %v634
        %v636 = vrot.slane %v330, 1
        %v637 = vrot.slane %v378, 1
        %v638 = vsel %vm611, %v636, %v637
        %v639 = vrot.slane %v331, 1
        %v640 = vrot.slane %v379, 1
        %v641 = vsel %vm611, %v639, %v640
        %v642 = vrot.slane %v332, 1
        %v643 = vrot.slane %v380, 1
        %v644 = vsel %vm611, %v642, %v643
        %v645 = vrot.slane %v333, 1
        %v646 = vrot.slane %v381, 1
        %v647 = vsel %vm611, %v645, %v646
        %v648 = vrot.slane %v334, 1
        %v649 = vrot.slane %v382, 1
        %v650 = vsel %vm611, %v648, %v649
        %v651 = vrot.slane %v335, 1
        %v652 = vrot.slane %v383, 1
        %v653 = vsel %vm611, %v651, %v652
        %v654 = vrot.slane %v336, 1
        %v655 = vrot.slane %v384, 1
        %v656 = vsel %vm611, %v654, %v655
        %v657 = vrot.slane %v337, 1
        %v658 = vrot.slane %v385, 1
        %v659 = vsel %vm611, %v657, %v658
        %660 = vrot.lane.b32.xlu0 %v614, 8
        %v661 = vpop.permute.xlu0 %660
        %662 = vrot.lane.b32.xlu0 %v617, 8
        %v663 = vpop.permute.xlu0 %662
        %664 = vrot.lane.b32.xlu0 %v620, 8
        %v665 = vpop.permute.xlu0 %664
        %666 = vrot.lane.b32.xlu0 %v623, 8
        %v667 = vpop.permute.xlu0 %666
        %668 = vrot.lane.b32.xlu0 %v626, 8
        %v669 = vpop.permute.xlu0 %668
        %670 = vrot.lane.b32.xlu0 %v629, 8
        %v671 = vpop.permute.xlu0 %670
        %672 = vrot.lane.b32.xlu0 %v632, 8
        %v673 = vpop.permute.xlu0 %672
        %674 = vrot.lane.b32.xlu0 %v635, 8
        %v675 = vpop.permute.xlu0 %674
        %676 = vrot.lane.b32.xlu0 %v638, 8
        %v677 = vpop.permute.xlu0 %676
        %678 = vrot.lane.b32.xlu0 %v641, 8
        %v679 = vpop.permute.xlu0 %678
        %680 = vrot.lane.b32.xlu0 %v644, 8
        %v681 = vpop.permute.xlu0 %680
        %682 = vrot.lane.b32.xlu0 %v647, 8
        %v683 = vpop.permute.xlu0 %682
        %684 = vrot.lane.b32.xlu0 %v650, 8
        %v685 = vpop.permute.xlu0 %684
        %686 = vrot.lane.b32.xlu0 %v653, 8
        %v687 = vpop.permute.xlu0 %686
        %688 = vrot.lane.b32.xlu0 %v656, 8
        %v689 = vpop.permute.xlu0 %688
        %690 = vrot.lane.b32.xlu0 %v659, 8
        %v691 = vpop.permute.xlu0 %690
        %v694 = vunpack.c.l.b16 %v252
        %v695 = vunpack.c.l.b16 %v253
        %v696 = vpack.c.b16 %v695, %v694
        %697 = vrot.lane.b32.xlu0 %v323, 12
        %v698 = vpop.permute.xlu0 %697
        %699 = vrot.lane.b32.xlu0 %v324, 12
        %v700 = vpop.permute.xlu0 %699
        %701 = vrot.lane.b32.xlu0 %v325, 12
        %v702 = vpop.permute.xlu0 %701
        %703 = vrot.lane.b32.xlu0 %v326, 12
        %v704 = vpop.permute.xlu0 %703
        %705 = vrot.lane.b32.xlu0 %v327, 12
        %v706 = vpop.permute.xlu0 %705
        %707 = vrot.lane.b32.xlu0 %v328, 12
        %v708 = vpop.permute.xlu0 %707
        %709 = vrot.lane.b32.xlu0 %v329, 12
        %v710 = vpop.permute.xlu0 %709
        %711 = vrot.lane.b32.xlu0 %v330, 12
        %v712 = vpop.permute.xlu0 %711
        %713 = vrot.lane.b32.xlu0 %v331, 12
        %v714 = vpop.permute.xlu0 %713
        %715 = vrot.lane.b32.xlu0 %v332, 12
        %v716 = vpop.permute.xlu0 %715
        %717 = vrot.lane.b32.xlu0 %v333, 12
        %v718 = vpop.permute.xlu0 %717
        %719 = vrot.lane.b32.xlu0 %v334, 12
        %v720 = vpop.permute.xlu0 %719
        %721 = vrot.lane.b32.xlu0 %v335, 12
        %v722 = vpop.permute.xlu0 %721
        %723 = vrot.lane.b32.xlu0 %v336, 12
        %v724 = vpop.permute.xlu0 %723
        %725 = vrot.lane.b32.xlu0 %v337, 12
        %v726 = vpop.permute.xlu0 %725
        %727 = vrot.lane.b32.xlu0 %v696, 12
        %v728 = vpop.permute.xlu0 %727
        %v730 = vunpack.c.l.b16 %v254
        %v731 = vpack.c.b16 %v730, %v730
        %v733 = vshrl.u32 %v696, 16
        %v735 = vshll.u32 %v696, 16
        %v737 = vrot.slane %v735, 1
        %v738 = vor.u32 %v733, %v737
        %v740 = vshll.u32 %v731, 16
        %v742 = vrot.slane %v740, 1
        %v743 = vsel %vm386, %v738, %v742
        %744 = vrot.lane.b32.xlu0 %v410, 16
        %v745 = vpop.permute.xlu0 %744
        %746 = vrot.lane.b32.xlu0 %v422, 16
        %v747 = vpop.permute.xlu0 %746
        %748 = vrot.lane.b32.xlu0 %v434, 16
        %v749 = vpop.permute.xlu0 %748
        %750 = vrot.lane.b32.xlu0 %v446, 16
        %v751 = vpop.permute.xlu0 %750
        %752 = vrot.lane.b32.xlu0 %v458, 16
        %v753 = vpop.permute.xlu0 %752
        %754 = vrot.lane.b32.xlu0 %v470, 16
        %v755 = vpop.permute.xlu0 %754
        %756 = vrot.lane.b32.xlu0 %v482, 16
        %v757 = vpop.permute.xlu0 %756
        %758 = vrot.lane.b32.xlu0 %v494, 16
        %v759 = vpop.permute.xlu0 %758
        %760 = vrot.lane.b32.xlu0 %v506, 16
        %v761 = vpop.permute.xlu0 %760
        %762 = vrot.lane.b32.xlu0 %v518, 16
        %v763 = vpop.permute.xlu0 %762
        %764 = vrot.lane.b32.xlu0 %v530, 16
        %v765 = vpop.permute.xlu0 %764
        %766 = vrot.lane.b32.xlu0 %v542, 16
        %v767 = vpop.permute.xlu0 %766
        %768 = vrot.lane.b32.xlu0 %v554, 16
        %v769 = vpop.permute.xlu0 %768
        %770 = vrot.lane.b32.xlu0 %v566, 16
        %v771 = vpop.permute.xlu0 %770
        %772 = vrot.lane.b32.xlu0 %v578, 16
        %v773 = vpop.permute.xlu0 %772
        %774 = vrot.lane.b32.xlu0 %v743, 16
        %v775 = vpop.permute.xlu0 %774
        %v776 = vrot.slane %v696, 1
        %v777 = vrot.slane %v731, 1
        %v778 = vsel %vm611, %v776, %v777
        %779 = vrot.lane.b32.xlu0 %v617, 20
        %v780 = vpop.permute.xlu0 %779
        %781 = vrot.lane.b32.xlu0 %v620, 20
        %v782 = vpop.permute.xlu0 %781
        %783 = vrot.lane.b32.xlu0 %v623, 20
        %v784 = vpop.permute.xlu0 %783
        %785 = vrot.lane.b32.xlu0 %v626, 20
        %v786 = vpop.permute.xlu0 %785
        %787 = vrot.lane.b32.xlu0 %v629, 20
        %v788 = vpop.permute.xlu0 %787
        %789 = vrot.lane.b32.xlu0 %v632, 20
        %v790 = vpop.permute.xlu0 %789
        %791 = vrot.lane.b32.xlu0 %v635, 20
        %v792 = vpop.permute.xlu0 %791
        %793 = vrot.lane.b32.xlu0 %v638, 20
        %v794 = vpop.permute.xlu0 %793
        %795 = vrot.lane.b32.xlu0 %v641, 20
        %v796 = vpop.permute.xlu0 %795
        %797 = vrot.lane.b32.xlu0 %v644, 20
        %v798 = vpop.permute.xlu0 %797
        %799 = vrot.lane.b32.xlu0 %v647, 20
        %v800 = vpop.permute.xlu0 %799
        %801 = vrot.lane.b32.xlu0 %v650, 20
        %v802 = vpop.permute.xlu0 %801
        %803 = vrot.lane.b32.xlu0 %v653, 20
        %v804 = vpop.permute.xlu0 %803
        %805 = vrot.lane.b32.xlu0 %v656, 20
        %v806 = vpop.permute.xlu0 %805
        %807 = vrot.lane.b32.xlu0 %v659, 20
        %v808 = vpop.permute.xlu0 %807
        %809 = vrot.lane.b32.xlu0 %v778, 20
        %v810 = vpop.permute.xlu0 %809
        %v813 = vunpack.c.l.b16 %v255
        %v814 = vunpack.c.l.b16 %v256
        %v815 = vpack.c.b16 %v814, %v813
        %816 = vrot.lane.b32.xlu0 %v324, 24
        %v817 = vpop.permute.xlu0 %816
        %818 = vrot.lane.b32.xlu0 %v325, 24
        %v819 = vpop.permute.xlu0 %818
        %820 = vrot.lane.b32.xlu0 %v326, 24
        %v821 = vpop.permute.xlu0 %820
        %822 = vrot.lane.b32.xlu0 %v327, 24
        %v823 = vpop.permute.xlu0 %822
        %824 = vrot.lane.b32.xlu0 %v328, 24
        %v825 = vpop.permute.xlu0 %824
        %826 = vrot.lane.b32.xlu0 %v329, 24
        %v827 = vpop.permute.xlu0 %826
        %828 = vrot.lane.b32.xlu0 %v330, 24
        %v829 = vpop.permute.xlu0 %828
        %830 = vrot.lane.b32.xlu0 %v331, 24
        %v831 = vpop.permute.xlu0 %830
        %832 = vrot.lane.b32.xlu0 %v332, 24
        %v833 = vpop.permute.xlu0 %832
        %834 = vrot.lane.b32.xlu0 %v333, 24
        %v835 = vpop.permute.xlu0 %834
        %836 = vrot.lane.b32.xlu0 %v334, 24
        %v837 = vpop.permute.xlu0 %836
        %838 = vrot.lane.b32.xlu0 %v335, 24
        %v839 = vpop.permute.xlu0 %838
        %840 = vrot.lane.b32.xlu0 %v336, 24
        %v841 = vpop.permute.xlu0 %840
        %842 = vrot.lane.b32.xlu0 %v337, 24
        %v843 = vpop.permute.xlu0 %842
        %844 = vrot.lane.b32.xlu0 %v696, 24
        %v845 = vpop.permute.xlu0 %844
        %846 = vrot.lane.b32.xlu0 %v815, 24
        %v847 = vpop.permute.xlu0 %846
        %v849 = vunpack.c.l.b16 %v257
        %v850 = vpack.c.b16 %v849, %v849
        %v852 = vshrl.u32 %v815, 16
        %v854 = vshll.u32 %v815, 16
        %v856 = vrot.slane %v854, 1
        %v857 = vor.u32 %v852, %v856
        %v859 = vshll.u32 %v850, 16
        %v861 = vrot.slane %v859, 1
        %v862 = vsel %vm386, %v857, %v861
        %863 = vrot.lane.b32.xlu0 %v422, 28
        %v864 = vpop.permute.xlu0 %863
        %865 = vrot.lane.b32.xlu0 %v434, 28
        %v866 = vpop.permute.xlu0 %865
        %867 = vrot.lane.b32.xlu0 %v446, 28
        %v868 = vpop.permute.xlu0 %867
        %869 = vrot.lane.b32.xlu0 %v458, 28
        %v870 = vpop.permute.xlu0 %869
        %871 = vrot.lane.b32.xlu0 %v470, 28
        %v872 = vpop.permute.xlu0 %871
        %873 = vrot.lane.b32.xlu0 %v482, 28
        %v874 = vpop.permute.xlu0 %873
        %875 = vrot.lane.b32.xlu0 %v494, 28
        %v876 = vpop.permute.xlu0 %875
        %877 = vrot.lane.b32.xlu0 %v506, 28
        %v878 = vpop.permute.xlu0 %877
        %879 = vrot.lane.b32.xlu0 %v518, 28
        %v880 = vpop.permute.xlu0 %879
        %881 = vrot.lane.b32.xlu0 %v530, 28
        %v882 = vpop.permute.xlu0 %881
        %883 = vrot.lane.b32.xlu0 %v542, 28
        %v884 = vpop.permute.xlu0 %883
        %885 = vrot.lane.b32.xlu0 %v554, 28
        %v886 = vpop.permute.xlu0 %885
        %887 = vrot.lane.b32.xlu0 %v566, 28
        %v888 = vpop.permute.xlu0 %887
        %889 = vrot.lane.b32.xlu0 %v578, 28
        %v890 = vpop.permute.xlu0 %889
        %891 = vrot.lane.b32.xlu0 %v743, 28
        %v892 = vpop.permute.xlu0 %891
        %893 = vrot.lane.b32.xlu0 %v862, 28
        %v894 = vpop.permute.xlu0 %893
        %v895 = vrot.slane %v815, 1
        %v896 = vrot.slane %v850, 1
        %v897 = vsel %vm611, %v895, %v896
        %898 = vrot.lane.b32.xlu0 %v620, 32
        %v899 = vpop.permute.xlu0 %898
        %900 = vrot.lane.b32.xlu0 %v623, 32
        %v901 = vpop.permute.xlu0 %900
        %902 = vrot.lane.b32.xlu0 %v626, 32
        %v903 = vpop.permute.xlu0 %902
        %904 = vrot.lane.b32.xlu0 %v629, 32
        %v905 = vpop.permute.xlu0 %904
        %906 = vrot.lane.b32.xlu0 %v632, 32
        %v907 = vpop.permute.xlu0 %906
        %908 = vrot.lane.b32.xlu0 %v635, 32
        %v909 = vpop.permute.xlu0 %908
        %910 = vrot.lane.b32.xlu0 %v638, 32
        %v911 = vpop.permute.xlu0 %910
        %912 = vrot.lane.b32.xlu0 %v641, 32
        %v913 = vpop.permute.xlu0 %912
        %914 = vrot.lane.b32.xlu0 %v644, 32
        %v915 = vpop.permute.xlu0 %914
        %916 = vrot.lane.b32.xlu0 %v647, 32
        %v917 = vpop.permute.xlu0 %916
        %918 = vrot.lane.b32.xlu0 %v650, 32
        %v919 = vpop.permute.xlu0 %918
        %920 = vrot.lane.b32.xlu0 %v653, 32
        %v921 = vpop.permute.xlu0 %920
        %922 = vrot.lane.b32.xlu0 %v656, 32
        %v923 = vpop.permute.xlu0 %922
        %924 = vrot.lane.b32.xlu0 %v659, 32
        %v925 = vpop.permute.xlu0 %924
        %926 = vrot.lane.b32.xlu0 %v778, 32
        %v927 = vpop.permute.xlu0 %926
        %928 = vrot.lane.b32.xlu0 %v897, 32
        %v929 = vpop.permute.xlu0 %928
        %vm930 = vcmask 31744
        %v932 = vsel %vm930, %v322, %v580
        %v934 = vsel %vm930, %v323, %v582
        %v936 = vsel %vm930, %v324, %v584
        %v938 = vsel %vm930, %v325, %v586
        %v940 = vsel %vm930, %v326, %v588
        %v942 = vsel %vm930, %v327, %v590
        %v944 = vsel %vm930, %v328, %v592
        %v946 = vsel %vm930, %v329, %v594
        %v948 = vsel %vm930, %v330, %v596
        %v950 = vsel %vm930, %v331, %v598
        %v952 = vsel %vm930, %v332, %v600
        %v954 = vsel %vm930, %v333, %v602
        %v956 = vsel %vm930, %v334, %v604
        %v958 = vsel %vm930, %v335, %v606
        %v960 = vsel %vm930, %v336, %v608
        %v962 = vsel %vm930, %v337, %v610
        %vm963 = vcmask 64512
        %v965 = vsel %vm963, %v932, %v661
        %v967 = vsel %vm963, %v934, %v663
        %v969 = vsel %vm963, %v936, %v665
        %v971 = vsel %vm963, %v938, %v667
        %v973 = vsel %vm963, %v940, %v669
        %v975 = vsel %vm963, %v942, %v671
        %v977 = vsel %vm963, %v944, %v673
        %v979 = vsel %vm963, %v946, %v675
        %v981 = vsel %vm963, %v948, %v677
        %v983 = vsel %vm963, %v950, %v679
        %v985 = vsel %vm963, %v952, %v681
        %v987 = vsel %vm963, %v954, %v683
        %v989 = vsel %vm963, %v956, %v685
        %v991 = vsel %vm963, %v958, %v687
        %v993 = vsel %vm963, %v960, %v689
        %v995 = vsel %vm963, %v962, %v691
        %vm996 = vcmask 97280
        %v998 = vsel %vm996, %v965, %v698
        %v1000 = vsel %vm996, %v967, %v700
        %v1002 = vsel %vm996, %v969, %v702
        %v1004 = vsel %vm996, %v971, %v704
        %v1006 = vsel %vm996, %v973, %v706
        %v1008 = vsel %vm996, %v975, %v708
        %v1010 = vsel %vm996, %v977, %v710
        %v1012 = vsel %vm996, %v979, %v712
        %v1014 = vsel %vm996, %v981, %v714
        %v1016 = vsel %vm996, %v983, %v716
        %v1018 = vsel %vm996, %v985, %v718
        %v1020 = vsel %vm996, %v987, %v720
        %v1022 = vsel %vm996, %v989, %v722
        %v1024 = vsel %vm996, %v991, %v724
        %v1026 = vsel %vm996, %v993, %v726
        %v1028 = vsel %vm996, %v995, %v728
        %vm1029 = vcmask 130048
        %v1031 = vsel %vm1029, %v998, %v745
        %v1033 = vsel %vm1029, %v1000, %v747
        %v1035 = vsel %vm1029, %v1002, %v749
        %v1037 = vsel %vm1029, %v1004, %v751
        %v1039 = vsel %vm1029, %v1006, %v753
        %v1041 = vsel %vm1029, %v1008, %v755
        %v1043 = vsel %vm1029, %v1010, %v757
        %v1045 = vsel %vm1029, %v1012, %v759
        %v1047 = vsel %vm1029, %v1014, %v761
        %v1049 = vsel %vm1029, %v1016, %v763
        %v1051 = vsel %vm1029, %v1018, %v765
        %v1053 = vsel %vm1029, %v1020, %v767
        %v1055 = vsel %vm1029, %v1022, %v769
        %v1057 = vsel %vm1029, %v1024, %v771
        %v1059 = vsel %vm1029, %v1026, %v773
        %v1061 = vsel %vm1029, %v1028, %v775
        %vm1062 = vcmask 162816
        %v1064 = vsel %vm1062, %v1031, %v780
        %v1066 = vsel %vm1062, %v1033, %v782
        %v1068 = vsel %vm1062, %v1035, %v784
        %v1070 = vsel %vm1062, %v1037, %v786
        %v1072 = vsel %vm1062, %v1039, %v788
        %v1074 = vsel %vm1062, %v1041, %v790
        %v1076 = vsel %vm1062, %v1043, %v792
        %v1078 = vsel %vm1062, %v1045, %v794
        %v1080 = vsel %vm1062, %v1047, %v796
        %v1082 = vsel %vm1062, %v1049, %v798
        %v1084 = vsel %vm1062, %v1051, %v800
        %v1086 = vsel %vm1062, %v1053, %v802
        %v1088 = vsel %vm1062, %v1055, %v804
        %v1090 = vsel %vm1062, %v1057, %v806
        %v1092 = vsel %vm1062, %v1059, %v808
        %v1094 = vsel %vm1062, %v1061, %v810
        %vm1095 = vcmask 195584
        %v1097 = vsel %vm1095, %v1064, %v817
        %v1099 = vsel %vm1095, %v1066, %v819
        %v1101 = vsel %vm1095, %v1068, %v821
        %v1103 = vsel %vm1095, %v1070, %v823
        %v1105 = vsel %vm1095, %v1072, %v825
        %v1107 = vsel %vm1095, %v1074, %v827
        %v1109 = vsel %vm1095, %v1076, %v829
        %v1111 = vsel %vm1095, %v1078, %v831
        %v1113 = vsel %vm1095, %v1080, %v833
        %v1115 = vsel %vm1095, %v1082, %v835
        %v1117 = vsel %vm1095, %v1084, %v837
        %v1119 = vsel %vm1095, %v1086, %v839
        %v1121 = vsel %vm1095, %v1088, %v841
        %v1123 = vsel %vm1095, %v1090, %v843
        %v1125 = vsel %vm1095, %v1092, %v845
        %v1127 = vsel %vm1095, %v1094, %v847
        %vm1128 = vcmask 228352
        %v1130 = vsel %vm1128, %v1097, %v864
        %v1132 = vsel %vm1128, %v1099, %v866
        %v1134 = vsel %vm1128, %v1101, %v868
        %v1136 = vsel %vm1128, %v1103, %v870
        %v1138 = vsel %vm1128, %v1105, %v872
        %v1140 = vsel %vm1128, %v1107, %v874
        %v1142 = vsel %vm1128, %v1109, %v876
        %v1144 = vsel %vm1128, %v1111, %v878
        %v1146 = vsel %vm1128, %v1113, %v880
        %v1148 = vsel %vm1128, %v1115, %v882
        %v1150 = vsel %vm1128, %v1117, %v884
        %v1152 = vsel %vm1128, %v1119, %v886
        %v1154 = vsel %vm1128, %v1121, %v888
        %v1156 = vsel %vm1128, %v1123, %v890
        %v1158 = vsel %vm1128, %v1125, %v892
        %v1160 = vsel %vm1128, %v1127, %v894
        %vm1161 = vcmask 261120
        %v1163 = vsel %vm1161, %v1130, %v899
        %v1165 = vsel %vm1161, %v1132, %v901
        %v1167 = vsel %vm1161, %v1134, %v903
        %v1169 = vsel %vm1161, %v1136, %v905
        %v1171 = vsel %vm1161, %v1138, %v907
        %v1173 = vsel %vm1161, %v1140, %v909
        %v1175 = vsel %vm1161, %v1142, %v911
        %v1177 = vsel %vm1161, %v1144, %v913
        %v1179 = vsel %vm1161, %v1146, %v915
        %v1181 = vsel %vm1161, %v1148, %v917
        %v1183 = vsel %vm1161, %v1150, %v919
        %v1185 = vsel %vm1161, %v1152, %v921
        %v1187 = vsel %vm1161, %v1154, %v923
        %v1189 = vsel %vm1161, %v1156, %v925
        %v1191 = vsel %vm1161, %v1158, %v927
        %v1193 = vsel %vm1161, %v1160, %v929
        %v1194 = vld [vmem:[%s1] sm:$0xf]
        %v1195 = vld [vmem:[%s1 + $0x4] sm:$0xf]
        %v1196 = vld [vmem:[%s1 + $0x8] sm:$0xf]
        %v1197 = vld [vmem:[%s1 + $0xc] sm:$0xf]
        %v1198 = vld [vmem:[%s1 + $0x10] sm:$0x3]
        %v1204 = vunpack.c.l.b16 %v1194
        %v1205 = vunpack.c.l.b16 %v1195
        %v1206 = vunpack.c.l.b16 %v1196
        %v1207 = vunpack.c.l.b16 %v1197
        %v1208 = vunpack.c.l.b16 %v1198
        %v1209 = vpack.c.b16 %v1205, %v1204
        %v1210 = vpack.c.b16 %v1207, %v1206
        %v1211 = vpack.c.b16 %v1208, %v1208
        %vm1214 = vcmask 293888
        %v1215 = vsel %vm1214, %v1163, 0
        %v1217 = vsel %vm1214, %v1165, 0
        %v1219 = vsel %vm1214, %v1167, 0
        %v1221 = vsel %vm1214, %v1169, 0
        %v1223 = vsel %vm1214, %v1171, 0
        %v1225 = vsel %vm1214, %v1173, 0
        %v1227 = vsel %vm1214, %v1175, 0
        %v1229 = vsel %vm1214, %v1177, 0
        %v1231 = vsel %vm1214, %v1179, 0
        %v1233 = vsel %vm1214, %v1181, 0
        %v1235 = vsel %vm1214, %v1183, 0
        %v1237 = vsel %vm1214, %v1185, 0
        %v1239 = vsel %vm1214, %v1187, 0
        %v1241 = vsel %vm1214, %v1189, 0
        %v1243 = vsel %vm1214, %v1191, 0
        %v1245 = vsel %vm1214, %v1193, 0
        %vm1247 = vcmask 1041408
        %v1249 = vsel %vm1247, %v1211, 0
        %1251 = vmatprep.subr.bf16.mxu0 0
        %1252 = vmatpush1.bf16.msra.mxu0 0
        %1253 = vmatprep.subr.bf16.mxu0 0
        %1254 = vmatpush1.bf16.msra.mxu0 0
        %1255 = vmatprep.subr.bf16.mxu0 0
        %1256 = vmatpush1.bf16.msra.mxu0 0
        %1257 = vmatprep.subr.bf16.mxu0 0
        %1258 = vmatpush1.bf16.msra.mxu0 0
        %1259 = vmatprep.subr.bf16.mxu0 0
        %1260 = vmatpush1.bf16.msra.mxu0 0
        %1261 = vmatprep.subr.bf16.mxu0 0
        %1262 = vmatpush1.bf16.msra.mxu0 %v1249
        %1263 = vmatprep.subr.bf16.mxu0 0
        %1264 = vmatpush1.bf16.msra.mxu0 %v1210
        %1265 = vmatprep.subr.bf16.mxu0 0
        %1266 = vmatpush1.bf16.msra.mxu0 %v1209
        %1267 = vmatprep.subr.bf16.mxu0 0
        %1268 = vmatpush2.bf16.msra.mxu0 0
        %1269 = vmatprep.subr.bf16.mxu0 0
        %1270 = vmatpush2.bf16.msra.mxu0 0
        %1271 = vmatprep.subr.bf16.mxu0 0
        %1272 = vmatpush2.bf16.msra.mxu0 0
        %1273 = vmatprep.subr.bf16.mxu0 0
        %1274 = vmatpush2.bf16.msra.mxu0 0
        %1275 = vmatprep.subr.bf16.mxu0 0
        %1276 = vmatpush2.bf16.msra.mxu0 0
        %1277 = vmatprep.subr.bf16.mxu0 0
        %1278 = vmatpush2.bf16.msra.mxu0 0
        %1279 = vmatprep.subr.bf16.mxu0 0
        %1280 = vmatpush2.bf16.msra.mxu0 0
        %1281 = vmatprep.subr.bf16.mxu0 0
        %1282 = vmatpush2.bf16.msra.mxu0 0
        %1283 = vmatprep.mubr.bf16.mxu0 0
        %1284 = vmatmul.mubr.bf16.gmra.mxu0 %v1215
        %v1285 = vpop.f32.mrf.mxu0
        %v1286 = vadd.f32 0.0, %v1285
        %v1287 = vpop.f32.mrf.mxu0
        %v1288 = vpop.f32.mrf.mxu0
        %v1289 = vadd.f32 0.0, %v1288
        %v1290 = vpop.f32.mrf.mxu0
        %1291 = vmatprep.mubr.bf16.mxu0 0
        %1292 = vmatmul.mubr.bf16.gmra.mxu0 %v1217
        %v1293 = vpop.f32.mrf.mxu0
        %v1294 = vadd.f32 0.0, %v1293
        %v1295 = vpop.f32.mrf.mxu0
        %v1296 = vpop.f32.mrf.mxu0
        %v1297 = vadd.f32 0.0, %v1296
        %v1298 = vpop.f32.mrf.mxu0
        %1299 = vmatprep.mubr.bf16.mxu0 0
        %1300 = vmatmul.mubr.bf16.gmra.mxu0 %v1219
        %v1301 = vpop.f32.mrf.mxu0
        %v1302 = vadd.f32 0.0, %v1301
        %v1303 = vpop.f32.mrf.mxu0
        %v1304 = vpop.f32.mrf.mxu0
        %v1305 = vadd.f32 0.0, %v1304
        %v1306 = vpop.f32.mrf.mxu0
        %1307 = vmatprep.mubr.bf16.mxu0 0
        %1308 = vmatmul.mubr.bf16.gmra.mxu0 %v1221
        %v1309 = vpop.f32.mrf.mxu0
        %v1310 = vadd.f32 0.0, %v1309
        %v1311 = vpop.f32.mrf.mxu0
        %v1312 = vpop.f32.mrf.mxu0
        %v1313 = vadd.f32 0.0, %v1312
        %v1314 = vpop.f32.mrf.mxu0
        %1315 = vmatprep.mubr.bf16.mxu0 0
        %1316 = vmatmul.mubr.bf16.gmra.mxu0 %v1223
        %v1317 = vpop.f32.mrf.mxu0
        %v1318 = vadd.f32 0.0, %v1317
        %v1319 = vpop.f32.mrf.mxu0
        %v1320 = vpop.f32.mrf.mxu0
        %v1321 = vadd.f32 0.0, %v1320
        %v1322 = vpop.f32.mrf.mxu0
        %1323 = vmatprep.mubr.bf16.mxu0 0
        %1324 = vmatmul.mubr.bf16.gmra.mxu0 %v1225
        %v1325 = vpop.f32.mrf.mxu0
        %v1326 = vadd.f32 0.0, %v1325
        %v1327 = vpop.f32.mrf.mxu0
        %v1328 = vpop.f32.mrf.mxu0
        %v1329 = vadd.f32 0.0, %v1328
        %v1330 = vpop.f32.mrf.mxu0
        %1331 = vmatprep.mubr.bf16.mxu0 0
        %1332 = vmatmul.mubr.bf16.gmra.mxu0 %v1227
        %v1333 = vpop.f32.mrf.mxu0
        %v1334 = vadd.f32 0.0, %v1333
        %v1335 = vpop.f32.mrf.mxu0
        %v1336 = vpop.f32.mrf.mxu0
        %v1337 = vadd.f32 0.0, %v1336
        %v1338 = vpop.f32.mrf.mxu0
        %1339 = vmatprep.mubr.bf16.mxu0 0
        %1340 = vmatmul.mubr.bf16.gmra.mxu0 %v1229
        %v1341 = vpop.f32.mrf.mxu0
        %v1342 = vadd.f32 0.0, %v1341
        %v1343 = vpop.f32.mrf.mxu0
        %v1344 = vpop.f32.mrf.mxu0
        %v1345 = vadd.f32 0.0, %v1344
        %v1346 = vpop.f32.mrf.mxu0
        %1347 = vmatprep.mubr.bf16.mxu0 0
        %1348 = vmatmul.mubr.bf16.gmra.mxu0 %v1231
        %v1349 = vpop.f32.mrf.mxu0
        %v1350 = vadd.f32 0.0, %v1349
        %v1351 = vpop.f32.mrf.mxu0
        %v1352 = vpop.f32.mrf.mxu0
        %v1353 = vadd.f32 0.0, %v1352
        %v1354 = vpop.f32.mrf.mxu0
        %1355 = vmatprep.mubr.bf16.mxu0 0
        %1356 = vmatmul.mubr.bf16.gmra.mxu0 %v1233
        %v1357 = vpop.f32.mrf.mxu0
        %v1358 = vadd.f32 0.0, %v1357
        %v1359 = vpop.f32.mrf.mxu0
        %v1360 = vpop.f32.mrf.mxu0
        %v1361 = vadd.f32 0.0, %v1360
        %v1362 = vpop.f32.mrf.mxu0
        %1363 = vmatprep.mubr.bf16.mxu0 0
        %1364 = vmatmul.mubr.bf16.gmra.mxu0 %v1235
        %v1365 = vpop.f32.mrf.mxu0
        %v1366 = vadd.f32 0.0, %v1365
        %v1367 = vpop.f32.mrf.mxu0
        %v1368 = vpop.f32.mrf.mxu0
        %v1369 = vadd.f32 0.0, %v1368
        %v1370 = vpop.f32.mrf.mxu0
        %1371 = vmatprep.mubr.bf16.mxu0 0
        %1372 = vmatmul.mubr.bf16.gmra.mxu0 %v1237
        %v1373 = vpop.f32.mrf.mxu0
        %v1374 = vadd.f32 0.0, %v1373
        %v1375 = vpop.f32.mrf.mxu0
        %v1376 = vpop.f32.mrf.mxu0
        %v1377 = vadd.f32 0.0, %v1376
        %v1378 = vpop.f32.mrf.mxu0
        %1379 = vmatprep.mubr.bf16.mxu0 0
        %1380 = vmatmul.mubr.bf16.gmra.mxu0 %v1239
        %v1381 = vpop.f32.mrf.mxu0
        %v1382 = vadd.f32 0.0, %v1381
        %v1383 = vpop.f32.mrf.mxu0
        %v1384 = vpop.f32.mrf.mxu0
        %v1385 = vadd.f32 0.0, %v1384
        %v1386 = vpop.f32.mrf.mxu0
        %1387 = vmatprep.mubr.bf16.mxu0 0
        %1388 = vmatmul.mubr.bf16.gmra.mxu0 %v1241
        %v1389 = vpop.f32.mrf.mxu0
        %v1390 = vadd.f32 0.0, %v1389
        %v1391 = vpop.f32.mrf.mxu0
        %v1392 = vpop.f32.mrf.mxu0
        %v1393 = vadd.f32 0.0, %v1392
        %v1394 = vpop.f32.mrf.mxu0
        %1395 = vmatprep.mubr.bf16.mxu0 0
        %1396 = vmatmul.mubr.bf16.gmra.mxu0 %v1243
        %v1397 = vpop.f32.mrf.mxu0
        %v1398 = vadd.f32 0.0, %v1397
        %v1399 = vpop.f32.mrf.mxu0
        %v1400 = vpop.f32.mrf.mxu0
        %v1401 = vadd.f32 0.0, %v1400
        %v1402 = vpop.f32.mrf.mxu0
        %1403 = vmatprep.mubr.bf16.mxu0 0
        %1404 = vmatmul.mubr.bf16.gmra.mxu0 %v1245
        %v1405 = vpop.f32.mrf.mxu0
        %v1406 = vadd.f32 0.0, %v1405
        %v1407 = vpop.f32.mrf.mxu0
        %v1408 = vpop.f32.mrf.mxu0
        %v1409 = vadd.f32 0.0, %v1408
        %v1410 = vpop.f32.mrf.mxu0
        %1411 = vdwg.mxu0
        %v1412 = vadd.f32 %v1286, %v1289
        %v1413 = vadd.f32 %v1412, %v1294
        %v1414 = vadd.f32 %v1413, %v1297
        %v1415 = vadd.f32 %v1414, %v1302
        %v1416 = vadd.f32 %v1415, %v1305
        %v1417 = vadd.f32 %v1416, %v1310
        %v1418 = vadd.f32 %v1417, %v1313
        %v1419 = vadd.f32 %v1418, %v1318
        %v1420 = vadd.f32 %v1419, %v1321
        %v1421 = vadd.f32 %v1420, %v1326
        %v1422 = vadd.f32 %v1421, %v1329
        %v1423 = vadd.f32 %v1422, %v1334
        %v1424 = vadd.f32 %v1423, %v1337
        %v1425 = vadd.f32 %v1424, %v1342
        %v1426 = vadd.f32 %v1425, %v1345
        %v1427 = vadd.f32 %v1426, %v1350
        %v1428 = vadd.f32 %v1427, %v1353
        %v1429 = vadd.f32 %v1428, %v1358
        %v1430 = vadd.f32 %v1429, %v1361
        %v1431 = vadd.f32 %v1430, %v1366
        %v1432 = vadd.f32 %v1431, %v1369
        %v1433 = vadd.f32 %v1432, %v1374
        %v1434 = vadd.f32 %v1433, %v1377
        %v1435 = vadd.f32 %v1434, %v1382
        %v1436 = vadd.f32 %v1435, %v1385
        %v1437 = vadd.f32 %v1436, %v1390
        %v1438 = vadd.f32 %v1437, %v1393
        %v1439 = vadd.f32 %v1438, %v1398
        %v1440 = vadd.f32 %v1439, %v1401
        %v1441 = vadd.f32 %v1440, %v1406
        %v1442 = vadd.f32 %v1441, %v1409
        %v1443 = vrot.slane %v1442, 4
        %v1444 = vadd.f32 %v1442, %v1443
        %v1445 = vrot.slane %v1444, 2
        %v1446 = vadd.f32 %v1444, %v1445
        %v1447 = vrot.slane %v1446, 1
        %v1448 = vadd.f32 %v1446, %v1447
        %v1449 = vmul.f32 %v1286, %v1286
        %v1450 = vmul.f32 %v1289, %v1289
        %v1451 = vmul.f32 %v1294, %v1294
        %v1452 = vmul.f32 %v1297, %v1297
        %v1453 = vmul.f32 %v1302, %v1302
        %v1454 = vmul.f32 %v1305, %v1305
        %v1455 = vmul.f32 %v1310, %v1310
        %v1456 = vmul.f32 %v1313, %v1313
        %v1457 = vmul.f32 %v1318, %v1318
        %v1458 = vmul.f32 %v1321, %v1321
        %v1459 = vmul.f32 %v1326, %v1326
        %v1460 = vmul.f32 %v1329, %v1329
        %v1461 = vmul.f32 %v1334, %v1334
        %v1462 = vmul.f32 %v1337, %v1337
        %v1463 = vmul.f32 %v1342, %v1342
        %v1464 = vmul.f32 %v1345, %v1345
        %v1465 = vmul.f32 %v1350, %v1350
        %v1466 = vmul.f32 %v1353, %v1353
        %v1467 = vmul.f32 %v1358, %v1358
        %v1468 = vmul.f32 %v1361, %v1361
        %v1469 = vmul.f32 %v1366, %v1366
        %v1470 = vmul.f32 %v1369, %v1369
        %v1471 = vmul.f32 %v1374, %v1374
        %v1472 = vmul.f32 %v1377, %v1377
        %v1473 = vmul.f32 %v1382, %v1382
        %v1474 = vmul.f32 %v1385, %v1385
        %v1475 = vmul.f32 %v1390, %v1390
        %v1476 = vmul.f32 %v1393, %v1393
        %v1477 = vmul.f32 %v1398, %v1398
        %v1478 = vmul.f32 %v1401, %v1401
        %v1479 = vmul.f32 %v1406, %v1406
        %v1480 = vmul.f32 %v1409, %v1409
        %v1481 = vadd.f32 %v1449, %v1450
        %v1482 = vadd.f32 %v1481, %v1451
        %v1483 = vadd.f32 %v1482, %v1452
        %v1484 = vadd.f32 %v1483, %v1453
        %v1485 = vadd.f32 %v1484, %v1454
        %v1486 = vadd.f32 %v1485, %v1455
        %v1487 = vadd.f32 %v1486, %v1456
        %v1488 = vadd.f32 %v1487, %v1457
        %v1489 = vadd.f32 %v1488, %v1458
        %v1490 = vadd.f32 %v1489, %v1459
        %v1491 = vadd.f32 %v1490, %v1460
        %v1492 = vadd.f32 %v1491, %v1461
        %v1493 = vadd.f32 %v1492, %v1462
        %v1494 = vadd.f32 %v1493, %v1463
        %v1495 = vadd.f32 %v1494, %v1464
        %v1496 = vadd.f32 %v1495, %v1465
        %v1497 = vadd.f32 %v1496, %v1466
        %v1498 = vadd.f32 %v1497, %v1467
        %v1499 = vadd.f32 %v1498, %v1468
        %v1500 = vadd.f32 %v1499, %v1469
        %v1501 = vadd.f32 %v1500, %v1470
        %v1502 = vadd.f32 %v1501, %v1471
        %v1503 = vadd.f32 %v1502, %v1472
        %v1504 = vadd.f32 %v1503, %v1473
        %v1505 = vadd.f32 %v1504, %v1474
        %v1506 = vadd.f32 %v1505, %v1475
        %v1507 = vadd.f32 %v1506, %v1476
        %v1508 = vadd.f32 %v1507, %v1477
        %v1509 = vadd.f32 %v1508, %v1478
        %v1510 = vadd.f32 %v1509, %v1479
        %v1511 = vadd.f32 %v1510, %v1480
        %v1512 = vrot.slane %v1511, 4
        %v1513 = vadd.f32 %v1511, %v1512
        %v1514 = vrot.slane %v1513, 2
        %v1515 = vadd.f32 %v1513, %v1514
        %v1516 = vrot.slane %v1515, 1
        %v1517 = vadd.f32 %v1515, %v1516
        %1518 = vst [vmem:[%s187] sm:$0x1] %v1448
        %1519 = vst [vmem:[%s193] sm:$0x1] %v1517
        %s1520 = sand.u32 %s92, 1
        %s1521 = scalar_lea.sflag [#allocation3], %s1520
        %s1522 = sand.u32 %s92, 1
        %s1523 = scalar_lea.vmem [#allocation2], %s1522
        %s1524 = sand.u32 %s120, 1
        %s1525 = scalar_lea.sflag [#allocation5], %s1524
        %s1526 = sand.u32 %s120, 1
        %s1527 = scalar_lea.vmem [#allocation4], %s1526
        // Predicated region
        $region29: #{tpu_custom_call.1} parent=27 // pred_check
          %p1528 = pneg %p102
        $region30: #{tpu_custom_call.1} parent=27 // pred_check_branch
          %1530 = sbr.rel (%p1528) target = $region32
        $region31: #{tpu_custom_call.1} parent=27 // pred_region
          %s1531 = sadd.s32 %s25, %s26
          %s1533 = ssub.s32 16, 16
          %1534 = vsyncadd %s1521, %s1533
          %s1535 = smul.addr %s1531, 16
          %s1536 = scalar_lea.hbm %s2, %s1535
          %s1538 = sshll.u32 %s1523, 4
          %s1539 = int_to_ptr.vmem [resolvable:$true] %s1538
          %1541 = dma.vmem_to_hbm [thread:$0]  %s1539, 16, %s1536, %s1521
        $region32: #{tpu_custom_call.1} parent=27 // pred_fallthru
          _
        // Predicated region
        $region33: #{tpu_custom_call.1} parent=27 // pred_check
          %p1542 = pneg %p130
        $region34: #{tpu_custom_call.1} parent=27 // pred_check_branch
          %1544 = sbr.rel (%p1542) target = $region36
        $region35: #{tpu_custom_call.1} parent=27 // pred_region
          %s1545 = sadd.s32 %s25, %s26
          %s1547 = ssub.s32 16, 16
          %1548 = vsyncadd %s1525, %s1547
          %s1549 = smul.addr %s1545, 16
          %s1550 = scalar_lea.hbm %s3, %s1549
          %s1552 = sshll.u32 %s1527, 4
          %s1553 = int_to_ptr.vmem [resolvable:$true] %s1552
          %1555 = dma.vmem_to_hbm [thread:$0]  %s1553, 16, %s1550, %s1525
        $region36: #{tpu_custom_call.1} parent=27 // pred_fallthru
          _
      $region28: #{tpu_custom_call.1} parent=5 // pred_fallthru
        _
      %p1556 = scmp.le.s32.totalorder 2, %s16
      // Predicated region
      $region37: #{tpu_custom_call.1} parent=5 // pred_check
        %p1557 = pneg %p1556
      $region38: #{tpu_custom_call.1} parent=5 // pred_check_branch
        %1559 = sbr.rel (%p1557) target = $region40
      $region39: #{tpu_custom_call.1} parent=5 // pred_region
        %s1560 = ssub.s32 %s16, 2
        // Predicated region
        $region41: #{tpu_custom_call.1} parent=39 // pred_check
          %p1561 = pneg %p108
        $region42: #{tpu_custom_call.1} parent=39 // pred_check_branch
          %1563 = sbr.rel (%p1561) target = $region44
        $region43: #{tpu_custom_call.1} parent=39 // pred_region
          %s1564 = sand.u32 %s93, 1
          %s1565 = scalar_lea.sflag [#allocation3], %s1564
          %s1566 = sand.u32 %s93, 1
          %s1567 = scalar_lea.vmem [#allocation2], %s1566
          %1568 = dma.done %s1565, 16
        $region44: #{tpu_custom_call.1} parent=39 // pred_fallthru
          _
        // Predicated region
        $region45: #{tpu_custom_call.1} parent=39 // pred_check
          %p1569 = pneg %p136
        $region46: #{tpu_custom_call.1} parent=39 // pred_check_branch
          %1571 = sbr.rel (%p1569) target = $region48
        $region47: #{tpu_custom_call.1} parent=39 // pred_region
          %s1572 = sand.u32 %s121, 1
          %s1573 = scalar_lea.sflag [#allocation5], %s1572
          %s1574 = sand.u32 %s121, 1
          %s1575 = scalar_lea.vmem [#allocation4], %s1574
          %1576 = dma.done %s1573, 16
        $region48: #{tpu_custom_call.1} parent=39 // pred_fallthru
          _
      $region40: #{tpu_custom_call.1} parent=5 // pred_fallthru
        _
    $region6: #{tpu_custom_call.1} parent=1 // loop_footer
      %s20 = sadd.s32 1, %s16
    $region7: #{tpu_custom_call.1} parent=1 // loop_footer_branch
      %15 = sbr.rel target = $region3
    $region8: #{tpu_custom_call.1} parent=1 // loop_exit
      _
    %1577 = vsyncpa [#allocation3], 1
    %s1578 = scalar_lea.sflag [#allocation3], 1
    %1579 = vsyncpa %s1578, 1
    %1580 = vsyncpa [#allocation5], 1
    %s1581 = scalar_lea.sflag [#allocation5], 1
    %1582 = vsyncpa %s1581, 1

</llo_original>
